<compile_context>
chip_gen: v5e
topology: v5e:2x2
jax: 0.10.0
libtpu: 0.0.40
codegen_flags: <defaults>
</compile_context>

<pallas_src>
import math

import jax
import jax.numpy as jnp
from jax import lax
from jax.experimental import pallas as pl
from jax.experimental.pallas import tpu as pltpu

B_BLK = 8  # batch rows packed into the vreg sublane dimension


def _round_up(x, m):
    return ((x + m - 1) // m) * m


def _tree_sum(terms):
    """Pairwise (log-depth) sum of a list of arrays."""
    terms = list(terms)
    while len(terms) > 1:
        nxt = [terms[i] + terms[i + 1] for i in range(0, len(terms) - 1, 2)]
        if len(terms) % 2:
            nxt.append(terms[-1])
        terms = nxt
    return terms[0]


# ----------------------------------------------------------------------------
# Parameter initialization (deterministic, mirrors RealStateSpaceModel.__init__)
# ----------------------------------------------------------------------------
def init_params(key, input_size, state_size, output_size, state_blk_size=2):
    assert state_blk_size % 2 == 0
    assert state_size % state_blk_size == 0
    num_blks = state_size // state_blk_size
    k1, k2, k3 = jax.random.split(key, 3)

    theta = 2.0 * jnp.pi * jax.random.uniform(k1, (state_size // 2,), jnp.float32)
    c, s = jnp.cos(theta), jnp.sin(theta)
    A2 = jnp.stack([jnp.stack([c, s], axis=-1),
                    jnp.stack([-s, c], axis=-1)], axis=-2)      # [S/2, 2, 2]

    half = state_blk_size // 2
    A_blocks = jnp.zeros((num_blks, state_blk_size, state_blk_size), jnp.float32)
    for i in range(num_blks):
        blk = jnp.zeros((state_blk_size, state_blk_size), jnp.float32)
        for j in range(half):
            blk = blk.at[2 * j:2 * j + 2, 2 * j:2 * j + 2].set(A2[i * half + j])
        A_blocks = A_blocks.at[i].set(blk)

    B = jax.random.normal(k2, (input_size, state_size), jnp.float32) / math.sqrt(
        state_size + input_size)
    C = jax.random.normal(k3, (state_size, output_size), jnp.float32) / math.sqrt(
        state_size + output_size)
    return {"A": A_blocks, "B": B, "C": C}


def block_diag_full(A_blocks):
    """[K, n, n] block-diagonal blocks -> full [K*n, K*n] matrix (reference)."""
    K, n, _ = A_blocks.shape
    S = K * n
    Af = jnp.zeros((S, S), A_blocks.dtype)
    for i in range(K):
        Af = Af.at[i * n:(i + 1) * n, i * n:(i + 1) * n].set(A_blocks[i])
    return Af


# ----------------------------------------------------------------------------
# Pallas kernel
# ----------------------------------------------------------------------------
def _make_ssm_kernel(n, kpad, t_blk, length):
    """n = state block size (phases), kpad = padded #blocks (lane dim),
    t_blk = timesteps per grid step, length = true sequence length."""
    n_kpad = n * kpad
    n_groups = t_blk // 8
    # Row (in the chunk state history) of the last *valid* timestep of the
    # last chunk; the padded tail beyond it is computed but never read.
    last_row = ((length - 1) % t_blk) * B_BLK

    def kernel(u_ref, x0_ref, a_ref, b_ref, c_ref,        # inputs
               y_ref, xf_ref,                             # outputs
               ub_scr, xs_scr, xst_scr):                  # scratch
        c_idx = pl.program_id(1)

        # (Re)load the initial state at the first chunk of every batch block.
        @pl.when(c_idx == 0)
        def _():
            xst_scr[...] = x0_ref[0]

        # One fused MXU matmul for the whole chunk's input projection
        # (bf16 operands, f32 accumulate). Rows are (t * 8 + b).
        ub_scr[...] = jnp.dot(u_ref[0], b_ref[...],
                              preferred_element_type=jnp.float32)

        # Hoisted, sublane-broadcast block-diagonal A coefficients:
        # a_bc[q][p][b, k] = A_blocks[k, q, p]  (identical for all 8 rows b).
        a_bc = [[jnp.broadcast_to(a_ref[q, p:p + 1, :], (B_BLK, kpad))
                 for p in range(n)] for q in range(n)]

        def group_body(g, carry):
            xs = list(carry)                               # n x (8, kpad) f32
            for j in range(8):                             # unrolled x8
                base = pl.multiple_of((g * 8 + j) * B_BLK, B_BLK)
                ub_t = ub_scr[pl.ds(base, B_BLK), :]       # aligned (8, n*kpad)
                new = []
                for p in range(n):
                    acc = _tree_sum(
                        [ub_t[:, p * kpad:(p + 1) * kpad]]
                        + [xs[q] * a_bc[q][p] for q in range(n)])
                    # Aligned, unmasked (8, kpad) store into the chunk history.
                    xs_scr[pl.ds(base, B_BLK), pl.ds(p * kpad, kpad)] = acc
                    new.append(acc)
                xs = new
            return tuple(xs)

        init = tuple(xst_scr[:, pl.ds(p * kpad, kpad)] for p in range(n))
        final = lax.fori_loop(0, n_groups, group_body, init)

        # Carry the state into the next time chunk of this batch block.
        for p in range(n):
            xst_scr[:, pl.ds(p * kpad, kpad)] = final[p]

        # Final-state output: on the last chunk, read back the last *valid*
        # timestep (no per-step tail masking in the hot loop).
        @pl.when(c_idx == pl.num_programs(1) - 1)
        def _():
            xf_ref[0] = xs_scr[pl.ds(last_row, B_BLK), :]

        # One fused MXU matmul for the output projection (bf16 operands, f32
        # accumulate), lane-dense store.
        y = jnp.dot(xs_scr[...].astype(c_ref.dtype), c_ref[...],
                    preferred_element_type=jnp.float32)
        y_ref[0] = y.astype(y_ref.dtype)

    return kernel


# ----------------------------------------------------------------------------
# Wrapper
# ----------------------------------------------------------------------------
def real_ssm_forward(u, params, x0=None, t_blk=512, mxu_dtype=jnp.bfloat16):
    """u: [batch, length, input_size]; x0: [batch, K, n] or None.
    Returns (y [batch, length, output_size], new_state [batch, K, n])."""
    batch, length, input_size = u.shape
    A_blocks, B, C = params["A"], params["B"], params["C"]
    K, n, _ = A_blocks.shape
    output_size = C.shape[1]

    if length == 0:
        y = jnp.zeros((batch, 0, output_size), jnp.float32)
        new_state = (jnp.zeros((batch, K, n), jnp.float32) if x0 is None
                     else x0.astype(jnp.float32))
        return y, new_state

    kpad = _round_up(K, 128)                    # lane-dense per-phase vectors
    n_kpad = n * kpad
    out_pad = _round_up(output_size, 128)       # lane-dense y stores
    batch_pad = _round_up(batch, B_BLK)
    n_bchunks = batch_pad // B_BLK
    compute_dtype = jnp.dtype(mxu_dtype)

    # Time-chunk size: multiple of 8, no larger than the padded sequence, and
    # clamped so the two big f32 scratch slabs stay <= ~12 MiB (fits v7x's
    # 64 MiB VMEM as well as v5e/v6e's 128 MiB).
    max_tblk = max(8, (((12 << 20) // (2 * B_BLK * n_kpad * 4)) // 8) * 8)
    t_blk = _round_up(max(1, min(t_blk, _round_up(length, 8), max_tblk)), 8)
    num_chunks = -(-length // t_blk)
    l_pad = num_chunks * t_blk

    # --- parameter re-packing (plain-JAX glue), phase-major lane layout ---
    # state index s = k*n + p  ->  lane p*kpad + k.
    b_packed = jnp.transpose(B.reshape(input_size, K, n), (0, 2, 1))     # (in,n,K)
    b_packed = jnp.pad(b_packed, ((0, 0), (0, 0), (0, kpad - K)))
    b_packed = b_packed.reshape(input_size, n_kpad).astype(compute_dtype)

    c_packed = jnp.transpose(C.reshape(K, n, output_size), (1, 0, 2))    # (n,K,out)
    c_packed = jnp.pad(c_packed, ((0, 0), (0, kpad - K),
                                  (0, out_pad - output_size)))
    c_packed = c_packed.reshape(n_kpad, out_pad).astype(compute_dtype)

    a_qp = jnp.transpose(A_blocks, (1, 2, 0))                            # (q,p,K)
    a_qp = jnp.pad(a_qp, ((0, 0), (0, 0), (0, kpad - K))).astype(jnp.float32)

    if x0 is None:
        x0_p = jnp.zeros((n_bchunks, B_BLK, n_kpad), jnp.float32)
    else:
        x0_p = jnp.pad(x0.astype(jnp.float32),
                       ((0, batch_pad - batch), (0, 0), (0, 0)))         # (bp,K,n)
        x0_p = jnp.transpose(x0_p, (0, 2, 1))                            # (bp,n,K)
        x0_p = jnp.pad(x0_p, ((0, 0), (0, 0), (0, kpad - K)))
        x0_p = x0_p.reshape(n_bchunks, B_BLK, n_kpad)

    # Pack 8 batch rows into the sublane dim: HBM row index = t*B_BLK + b.
    u_p = jnp.pad(u.astype(compute_dtype),
                  ((0, batch_pad - batch), (0, l_pad - length), (0, 0)))
    u_p = u_p.reshape(n_bchunks, B_BLK, l_pad, input_size)
    u_p = jnp.transpose(u_p, (0, 2, 1, 3)).reshape(
        n_bchunks, l_pad * B_BLK, input_size)

    kernel = _make_ssm_kernel(n, kpad, t_blk, length)

    y_pad, xf = pl.pallas_call(
        kernel,
        out_shape=(
            jax.ShapeDtypeStruct((n_bchunks, l_pad * B_BLK, out_pad), jnp.float32),
            jax.ShapeDtypeStruct((n_bchunks, B_BLK, n_kpad), jnp.float32),
        ),
        grid_spec=pltpu.PrefetchScalarGridSpec(
            num_scalar_prefetch=0,
            grid=(n_bchunks, num_chunks),
            in_specs=[
                pl.BlockSpec((1, t_blk * B_BLK, input_size),
                             lambda bi, ci: (bi, ci, 0)),
                pl.BlockSpec((1, B_BLK, n_kpad), lambda bi, ci: (bi, 0, 0)),
                pl.BlockSpec((n, n, kpad), lambda bi, ci: (0, 0, 0)),
                pl.BlockSpec((input_size, n_kpad), lambda bi, ci: (0, 0)),
                pl.BlockSpec((n_kpad, out_pad), lambda bi, ci: (0, 0)),
            ],
            out_specs=(
                pl.BlockSpec((1, t_blk * B_BLK, out_pad),
                             lambda bi, ci: (bi, ci, 0)),
                pl.BlockSpec((1, B_BLK, n_kpad), lambda bi, ci: (bi, 0, 0)),
            ),
            scratch_shapes=[
                pltpu.VMEM((t_blk * B_BLK, n_kpad), jnp.float32),  # u @ B
                pltpu.VMEM((t_blk * B_BLK, n_kpad), jnp.float32),  # state history
                pltpu.VMEM((B_BLK, n_kpad), jnp.float32),          # carried state
            ],
        ),
        compiler_params=pltpu.CompilerParams(
            dimension_semantics=("parallel", "arbitrary"),
            vmem_limit_bytes=48 * 1024 * 1024),
    )(u_p, x0_p, a_qp, b_packed, c_packed)

    y = y_pad.reshape(n_bchunks, l_pad, B_BLK, out_pad)
    y = jnp.transpose(y, (0, 2, 1, 3)).reshape(batch_pad, l_pad, out_pad)
    y = y[:batch, :length, :output_size]

    new_state = xf.reshape(batch_pad, n, kpad)[:batch, :, :K]
    new_state = jnp.transpose(new_state, (0, 2, 1))
    # TODO(synk): matrix D, bias b, resample_up/down > 1 and enforce_stability
    # (shrink_eigs) are module options defaulting to off; not wired in.
    # TODO(synk): for very small batch on v7x add a second "parallel" grid axis
    # over K-tiles (blocks are independent) so both TensorCores stay busy.
    # TODO(synk): for output_size << 128 the lane-padded y writeback is
    # amplified ~128/output_size; fold timesteps into lanes if it dominates.
    return y, new_state


# ----------------------------------------------------------------------------
# Pure-JAX reference (lax.scan) for correctness check
# ----------------------------------------------------------------------------
def reference_forward(u, params, x0=None):
    A_full = block_diag_full(params["A"])
    B, C = params["B"], params["C"]
    K, n, _ = params["A"].shape
    batch = u.shape[0]
    S = K * n
    x0f = (jnp.zeros((batch, S), jnp.float32) if x0 is None
           else x0.reshape(batch, S).astype(jnp.float32))
    hi = lax.Precision.HIGHEST

    def step(x, u_t):
        x_new = (jnp.dot(x, A_full, precision=hi)
                 + jnp.dot(u_t, B, precision=hi))
        return x_new, jnp.dot(x_new, C, precision=hi)

    x_last, ys = lax.scan(step, x0f, jnp.transpose(u, (1, 0, 2)))
    return jnp.transpose(ys, (1, 0, 2)), x_last.reshape(batch, K, n)


def _max_rel_err(a, b):
    return float(jnp.max(jnp.abs(a - b)) / (jnp.max(jnp.abs(b)) + 1e-6))


if __name__ == "__main__":
    master = jax.random.PRNGKey(0)

    def run_case(case_key, batch, length, input_size, state_size, output_size,
                 state_blk_size, t_blk, mxu_dtype, tol):
        K, n = state_size // state_blk_size, state_blk_size
        kp, ku, kx = jax.random.split(case_key, 3)
        params = init_params(kp, input_size, state_size, output_size,
                             state_blk_size)
        u = jax.random.normal(ku, (batch, length, input_size), jnp.float32)
        x0 = jax.random.normal(kx, (batch, K, n), jnp.float32)

        y, new_state = real_ssm_forward(u, params, x0, t_blk=t_blk,
                                        mxu_dtype=mxu_dtype)
        y = jax.block_until_ready(y)
        new_state = jax.block_until_ready(new_state)

        y_ref, state_ref = reference_forward(u, params, x0)
        assert y.shape == (batch, length, output_size)
        assert new_state.shape == (batch, K, n)
        ey = _max_rel_err(y, y_ref)
        es = _max_rel_err(new_state, state_ref)
        assert ey < tol, f"y rel err {ey} (dtype={mxu_dtype})"
        assert es < tol, f"state rel err {es} (dtype={mxu_dtype})"

    k1, k2, k3 = jax.random.split(master, 3)
    for dt, tol in ((jnp.float32, 1e-3), (jnp.bfloat16, 2e-2)):
        # Single-chunk case, module default block size 2.
        run_case(k1, batch=2, length=8, input_size=4, state_size=8,
                 output_size=6, state_blk_size=2, t_blk=512,
                 mxu_dtype=dt, tol=tol)
        # Multi-chunk case with ragged tail (chunk carry + final-state read).
        run_case(k2, batch=2, length=300, input_size=4, state_size=8,
                 output_size=6, state_blk_size=2, t_blk=64,
                 mxu_dtype=dt, tol=tol)
        # Larger state blocks (n=4) + two batch blocks of 8 (batch=10).
        run_case(k3, batch=10, length=40, input_size=4, state_size=8,
                 output_size=6, state_blk_size=4, t_blk=16,
                 mxu_dtype=dt, tol=tol)

    print("KERNEL_OK")
</pallas_src>

<mosaic_0001>
module attributes {stable_mosaic.version = 11 : i64} {
  func.func @kernel(%arg0: i32, %arg1: i32, %arg2: memref<1x64x4xf32, #tpu.memory_space<vmem>>, %arg3: memref<1x8x256xf32, #tpu.memory_space<vmem>>, %arg4: memref<2x2x128xf32, #tpu.memory_space<vmem>>, %arg5: memref<4x256xf32, #tpu.memory_space<vmem>>, %arg6: memref<256x128xf32, #tpu.memory_space<vmem>>, %arg7: memref<1x64x128xf32, #tpu.memory_space<vmem>>, %arg8: memref<1x8x256xf32, #tpu.memory_space<vmem>>, %arg9: memref<64x256xf32, #tpu.memory_space<vmem>>, %arg10: memref<64x256xf32, #tpu.memory_space<vmem>>, %arg11: memref<8x256xf32, #tpu.memory_space<vmem>>) attributes {dimension_semantics = [#tpu.dimension_semantics<parallel>, #tpu.dimension_semantics<arbitrary>], iteration_bounds = array<i64: 1, 1>, scalar_prefetch = 0 : i64, scratch_operands = 3 : i64, tpu.core_type = #tpu.core_type<tc>, window_params = [{transform_indices = @transform_0, window_bounds = array<i64: 1, 64, 4>}, {transform_indices = @transform_1, window_bounds = array<i64: 1, 8, 256>}, {pipeline_mode = #tpu.pipeline_mode<synchronous>, transform_indices = @transform_2, window_bounds = array<i64: 2, 2, 128>}, {pipeline_mode = #tpu.pipeline_mode<synchronous>, transform_indices = @transform_3, window_bounds = array<i64: 4, 256>}, {pipeline_mode = #tpu.pipeline_mode<synchronous>, transform_indices = @transform_4, window_bounds = array<i64: 256, 128>}, {transform_indices = @transform_5, window_bounds = array<i64: 1, 64, 128>}, {transform_indices = @transform_6, window_bounds = array<i64: 1, 8, 256>}]} {
    %c0_i32 = arith.constant 0 : i32
    %0 = arith.cmpi eq, %arg1, %c0_i32 : i32
    %1 = arith.extui %0 : i1 to i32
    %c0_i32_0 = arith.constant 0 : i32
    %2 = arith.cmpi ne, %1, %c0_i32_0 : i32
    scf.if %2 {
      %c0_77 = arith.constant 0 : index
      %c0_78 = arith.constant 0 : index
      %c0_79 = arith.constant 0 : index
      %197 = vector.load %arg3[%c0_77, %c0_78, %c0_79] : memref<1x8x256xf32, #tpu.memory_space<vmem>>, vector<1x8x256xf32>
      %198 = vector.shape_cast %197 : vector<1x8x256xf32> to vector<8x256xf32>
      %c0_80 = arith.constant 0 : index
      %c0_81 = arith.constant 0 : index
      %199 = vector.load %arg11[%c0_80, %c0_81] : memref<8x256xf32, #tpu.memory_space<vmem>>, vector<8x256xf32>
      tpu.vector_store %arg11[%c0_80, %c0_81], %198 {strides = array<i32>} : memref<8x256xf32, #tpu.memory_space<vmem>>, vector<8x256xf32>,
    } else {
    }
    %c0 = arith.constant 0 : index
    %c0_1 = arith.constant 0 : index
    %c0_2 = arith.constant 0 : index
    %3 = vector.load %arg2[%c0, %c0_1, %c0_2] : memref<1x64x4xf32, #tpu.memory_space<vmem>>, vector<1x64x4xf32>
    %4 = vector.shape_cast %3 : vector<1x64x4xf32> to vector<64x4xf32>
    %c0_3 = arith.constant 0 : index
    %c0_4 = arith.constant 0 : index
    %5 = vector.load %arg5[%c0_3, %c0_4] : memref<4x256xf32, #tpu.memory_space<vmem>>, vector<4x256xf32>
    %cst = arith.constant dense<0.000000e+00> : vector<64x256xf32>
    %6 = tpu.matmul %4, %5, %cst {dimension_numbers = #tpu.dot_dimension_numbers<[1], [0], [0], [1], [0, 0, 1, 1], [], []>} : vector<64x4xf32>, vector<4x256xf32>, vector<64x256xf32> -> vector<64x256xf32>
    %c0_5 = arith.constant 0 : index
    %c0_6 = arith.constant 0 : index
    %7 = vector.load %arg9[%c0_5, %c0_6] : memref<64x256xf32, #tpu.memory_space<vmem>>, vector<64x256xf32>
    tpu.vector_store %arg9[%c0_5, %c0_6], %6 {strides = array<i32>} : memref<64x256xf32, #tpu.memory_space<vmem>>, vector<64x256xf32>,
    %c0_7 = arith.constant 0 : index
    %c0_8 = arith.constant 0 : index
    %c0_9 = arith.constant 0 : index
    %8 = vector.load %arg4[%c0_7, %c0_8, %c0_9] : memref<2x2x128xf32, #tpu.memory_space<vmem>>, vector<1x1x128xf32>
    %9 = vector.shape_cast %8 : vector<1x1x128xf32> to vector<1x128xf32>
    %10 = vector.shape_cast %9 : vector<1x128xf32> to vector<1x128xf32>
    %11 = vector.broadcast %10 : vector<1x128xf32> to vector<8x128xf32>
    %c0_10 = arith.constant 0 : index
    %c1 = arith.constant 1 : index
    %c0_11 = arith.constant 0 : index
    %12 = vector.load %arg4[%c0_10, %c1, %c0_11] : memref<2x2x128xf32, #tpu.memory_space<vmem>>, vector<1x1x128xf32>
    %13 = vector.shape_cast %12 : vector<1x1x128xf32> to vector<1x128xf32>
    %14 = vector.shape_cast %13 : vector<1x128xf32> to vector<1x128xf32>
    %15 = vector.broadcast %14 : vector<1x128xf32> to vector<8x128xf32>
    %c1_12 = arith.constant 1 : index
    %c0_13 = arith.constant 0 : index
    %c0_14 = arith.constant 0 : index
    %16 = vector.load %arg4[%c1_12, %c0_13, %c0_14] : memref<2x2x128xf32, #tpu.memory_space<vmem>>, vector<1x1x128xf32>
    %17 = vector.shape_cast %16 : vector<1x1x128xf32> to vector<1x128xf32>
    %18 = vector.shape_cast %17 : vector<1x128xf32> to vector<1x128xf32>
    %19 = vector.broadcast %18 : vector<1x128xf32> to vector<8x128xf32>
    %c1_15 = arith.constant 1 : index
    %c1_16 = arith.constant 1 : index
    %c0_17 = arith.constant 0 : index
    %20 = vector.load %arg4[%c1_15, %c1_16, %c0_17] : memref<2x2x128xf32, #tpu.memory_space<vmem>>, vector<1x1x128xf32>
    %21 = vector.shape_cast %20 : vector<1x1x128xf32> to vector<1x128xf32>
    %22 = vector.shape_cast %21 : vector<1x128xf32> to vector<1x128xf32>
    %23 = vector.broadcast %22 : vector<1x128xf32> to vector<8x128xf32>
    %c0_18 = arith.constant 0 : index
    %c0_19 = arith.constant 0 : index
    %24 = vector.load %arg11[%c0_18, %c0_19] : memref<8x256xf32, #tpu.memory_space<vmem>>, vector<8x128xf32>
    %c0_20 = arith.constant 0 : index
    %c128 = arith.constant 128 : index
    %25 = vector.load %arg11[%c0_20, %c128] : memref<8x256xf32, #tpu.memory_space<vmem>>, vector<8x128xf32>
    %c0_i32_21 = arith.constant 0 : i32
    %c8_i32 = arith.constant 8 : i32
    %26 = arith.muli %c0_i32_21, %c8_i32 : i32
    %c0_i32_22 = arith.constant 0 : i32
    %27 = arith.addi %26, %c0_i32_22 : i32
    %c8_i32_23 = arith.constant 8 : i32
    %28 = arith.muli %27, %c8_i32_23 : i32
    %29 = tpu.assume_multiple %28, 8 : i32
    %30 = arith.index_cast %29 : i32 to index
    %c0_24 = arith.constant 0 : index
    %31 = vector.load %arg9[%30, %c0_24] : memref<64x256xf32, #tpu.memory_space<vmem>>, vector<8x256xf32>
    %32 = vector.extract_strided_slice %31 {offsets = [0, 0], sizes = [8, 128], strides = [1, 1]} : vector<8x256xf32> to vector<8x128xf32>
    %33 = arith.mulf %24, %11 : vector<8x128xf32>
    %34 = arith.mulf %25, %19 : vector<8x128xf32>
    %35 = arith.addf %32, %33 : vector<8x128xf32>
    %36 = arith.addf %35, %34 : vector<8x128xf32>
    %37 = arith.index_cast %29 : i32 to index
    %c0_25 = arith.constant 0 : index
    %38 = vector.load %arg10[%37, %c0_25] : memref<64x256xf32, #tpu.memory_space<vmem>>, vector<8x128xf32>
    tpu.vector_store %arg10[%37, %c0_25], %36 {strides = array<i32>} : memref<64x256xf32, #tpu.memory_space<vmem>>, vector<8x128xf32>,
    %39 = vector.extract_strided_slice %31 {offsets = [0, 128], sizes = [8, 128], strides = [1, 1]} : vector<8x256xf32> to vector<8x128xf32>
    %40 = arith.mulf %24, %15 : vector<8x128xf32>
    %41 = arith.mulf %25, %23 : vector<8x128xf32>
    %42 = arith.addf %39, %40 : vector<8x128xf32>
    %43 = arith.addf %42, %41 : vector<8x128xf32>
    %44 = arith.index_cast %29 : i32 to index
    %c128_26 = arith.constant 128 : index
    %45 = vector.load %arg10[%44, %c128_26] : memref<64x256xf32, #tpu.memory_space<vmem>>, vector<8x128xf32>
    tpu.vector_store %arg10[%44, %c128_26], %43 {strides = array<i32>} : memref<64x256xf32, #tpu.memory_space<vmem>>, vector<8x128xf32>,
    %c8_i32_27 = arith.constant 8 : i32
    %46 = arith.muli %c0_i32_21, %c8_i32_27 : i32
    %c1_i32 = arith.constant 1 : i32
    %47 = arith.addi %46, %c1_i32 : i32
    %c8_i32_28 = arith.constant 8 : i32
    %48 = arith.muli %47, %c8_i32_28 : i32
    %49 = tpu.assume_multiple %48, 8 : i32
    %50 = arith.index_cast %49 : i32 to index
    %c0_29 = arith.constant 0 : index
    %51 = vector.load %arg9[%50, %c0_29] : memref<64x256xf32, #tpu.memory_space<vmem>>, vector<8x256xf32>
    %52 = vector.extract_strided_slice %51 {offsets = [0, 0], sizes = [8, 128], strides = [1, 1]} : vector<8x256xf32> to vector<8x128xf32>
    %53 = arith.mulf %36, %11 : vector<8x128xf32>
    %54 = arith.mulf %43, %19 : vector<8x128xf32>
    %55 = arith.addf %52, %53 : vector<8x128xf32>
    %56 = arith.addf %55, %54 : vector<8x128xf32>
    %57 = arith.index_cast %49 : i32 to index
    %c0_30 = arith.constant 0 : index
    %58 = vector.load %arg10[%57, %c0_30] : memref<64x256xf32, #tpu.memory_space<vmem>>, vector<8x128xf32>
    tpu.vector_store %arg10[%57, %c0_30], %56 {strides = array<i32>} : memref<64x256xf32, #tpu.memory_space<vmem>>, vector<8x128xf32>,
    %59 = vector.extract_strided_slice %51 {offsets = [0, 128], sizes = [8, 128], strides = [1, 1]} : vector<8x256xf32> to vector<8x128xf32>
    %60 = arith.mulf %36, %15 : vector<8x128xf32>
    %61 = arith.mulf %43, %23 : vector<8x128xf32>
    %62 = arith.addf %59, %60 : vector<8x128xf32>
    %63 = arith.addf %62, %61 : vector<8x128xf32>
    %64 = arith.index_cast %49 : i32 to index
    %c128_31 = arith.constant 128 : index
    %65 = vector.load %arg10[%64, %c128_31] : memref<64x256xf32, #tpu.memory_space<vmem>>, vector<8x128xf32>
    tpu.vector_store %arg10[%64, %c128_31], %63 {strides = array<i32>} : memref<64x256xf32, #tpu.memory_space<vmem>>, vector<8x128xf32>,
    %c8_i32_32 = arith.constant 8 : i32
    %66 = arith.muli %c0_i32_21, %c8_i32_32 : i32
    %c2_i32 = arith.constant 2 : i32
    %67 = arith.addi %66, %c2_i32 : i32
    %c8_i32_33 = arith.constant 8 : i32
    %68 = arith.muli %67, %c8_i32_33 : i32
    %69 = tpu.assume_multiple %68, 8 : i32
    %70 = arith.index_cast %69 : i32 to index
    %c0_34 = arith.constant 0 : index
    %71 = vector.load %arg9[%70, %c0_34] : memref<64x256xf32, #tpu.memory_space<vmem>>, vector<8x256xf32>
    %72 = vector.extract_strided_slice %71 {offsets = [0, 0], sizes = [8, 128], strides = [1, 1]} : vector<8x256xf32> to vector<8x128xf32>
    %73 = arith.mulf %56, %11 : vector<8x128xf32>
    %74 = arith.mulf %63, %19 : vector<8x128xf32>
    %75 = arith.addf %72, %73 : vector<8x128xf32>
    %76 = arith.addf %75, %74 : vector<8x128xf32>
    %77 = arith.index_cast %69 : i32 to index
    %c0_35 = arith.constant 0 : index
    %78 = vector.load %arg10[%77, %c0_35] : memref<64x256xf32, #tpu.memory_space<vmem>>, vector<8x128xf32>
    tpu.vector_store %arg10[%77, %c0_35], %76 {strides = array<i32>} : memref<64x256xf32, #tpu.memory_space<vmem>>, vector<8x128xf32>,
    %79 = vector.extract_strided_slice %71 {offsets = [0, 128], sizes = [8, 128], strides = [1, 1]} : vector<8x256xf32> to vector<8x128xf32>
    %80 = arith.mulf %56, %15 : vector<8x128xf32>
    %81 = arith.mulf %63, %23 : vector<8x128xf32>
    %82 = arith.addf %79, %80 : vector<8x128xf32>
    %83 = arith.addf %82, %81 : vector<8x128xf32>
    %84 = arith.index_cast %69 : i32 to index
    %c128_36 = arith.constant 128 : index
    %85 = vector.load %arg10[%84, %c128_36] : memref<64x256xf32, #tpu.memory_space<vmem>>, vector<8x128xf32>
    tpu.vector_store %arg10[%84, %c128_36], %83 {strides = array<i32>} : memref<64x256xf32, #tpu.memory_space<vmem>>, vector<8x128xf32>,
    %c8_i32_37 = arith.constant 8 : i32
    %86 = arith.muli %c0_i32_21, %c8_i32_37 : i32
    %c3_i32 = arith.constant 3 : i32
    %87 = arith.addi %86, %c3_i32 : i32
    %c8_i32_38 = arith.constant 8 : i32
    %88 = arith.muli %87, %c8_i32_38 : i32
    %89 = tpu.assume_multiple %88, 8 : i32
    %90 = arith.index_cast %89 : i32 to index
    %c0_39 = arith.constant 0 : index
    %91 = vector.load %arg9[%90, %c0_39] : memref<64x256xf32, #tpu.memory_space<vmem>>, vector<8x256xf32>
    %92 = vector.extract_strided_slice %91 {offsets = [0, 0], sizes = [8, 128], strides = [1, 1]} : vector<8x256xf32> to vector<8x128xf32>
    %93 = arith.mulf %76, %11 : vector<8x128xf32>
    %94 = arith.mulf %83, %19 : vector<8x128xf32>
    %95 = arith.addf %92, %93 : vector<8x128xf32>
    %96 = arith.addf %95, %94 : vector<8x128xf32>
    %97 = arith.index_cast %89 : i32 to index
    %c0_40 = arith.constant 0 : index
    %98 = vector.load %arg10[%97, %c0_40] : memref<64x256xf32, #tpu.memory_space<vmem>>, vector<8x128xf32>
    tpu.vector_store %arg10[%97, %c0_40], %96 {strides = array<i32>} : memref<64x256xf32, #tpu.memory_space<vmem>>, vector<8x128xf32>,
    %99 = vector.extract_strided_slice %91 {offsets = [0, 128], sizes = [8, 128], strides = [1, 1]} : vector<8x256xf32> to vector<8x128xf32>
    %100 = arith.mulf %76, %15 : vector<8x128xf32>
    %101 = arith.mulf %83, %23 : vector<8x128xf32>
    %102 = arith.addf %99, %100 : vector<8x128xf32>
    %103 = arith.addf %102, %101 : vector<8x128xf32>
    %104 = arith.index_cast %89 : i32 to index
    %c128_41 = arith.constant 128 : index
    %105 = vector.load %arg10[%104, %c128_41] : memref<64x256xf32, #tpu.memory_space<vmem>>, vector<8x128xf32>
    tpu.vector_store %arg10[%104, %c128_41], %103 {strides = array<i32>} : memref<64x256xf32, #tpu.memory_space<vmem>>, vector<8x128xf32>,
    %c8_i32_42 = arith.constant 8 : i32
    %106 = arith.muli %c0_i32_21, %c8_i32_42 : i32
    %c4_i32 = arith.constant 4 : i32
    %107 = arith.addi %106, %c4_i32 : i32
    %c8_i32_43 = arith.constant 8 : i32
    %108 = arith.muli %107, %c8_i32_43 : i32
    %109 = tpu.assume_multiple %108, 8 : i32
    %110 = arith.index_cast %109 : i32 to index
    %c0_44 = arith.constant 0 : index
    %111 = vector.load %arg9[%110, %c0_44] : memref<64x256xf32, #tpu.memory_space<vmem>>, vector<8x256xf32>
    %112 = vector.extract_strided_slice %111 {offsets = [0, 0], sizes = [8, 128], strides = [1, 1]} : vector<8x256xf32> to vector<8x128xf32>
    %113 = arith.mulf %96, %11 : vector<8x128xf32>
    %114 = arith.mulf %103, %19 : vector<8x128xf32>
    %115 = arith.addf %112, %113 : vector<8x128xf32>
    %116 = arith.addf %115, %114 : vector<8x128xf32>
    %117 = arith.index_cast %109 : i32 to index
    %c0_45 = arith.constant 0 : index
    %118 = vector.load %arg10[%117, %c0_45] : memref<64x256xf32, #tpu.memory_space<vmem>>, vector<8x128xf32>
    tpu.vector_store %arg10[%117, %c0_45], %116 {strides = array<i32>} : memref<64x256xf32, #tpu.memory_space<vmem>>, vector<8x128xf32>,
    %119 = vector.extract_strided_slice %111 {offsets = [0, 128], sizes = [8, 128], strides = [1, 1]} : vector<8x256xf32> to vector<8x128xf32>
    %120 = arith.mulf %96, %15 : vector<8x128xf32>
    %121 = arith.mulf %103, %23 : vector<8x128xf32>
    %122 = arith.addf %119, %120 : vector<8x128xf32>
    %123 = arith.addf %122, %121 : vector<8x128xf32>
    %124 = arith.index_cast %109 : i32 to index
    %c128_46 = arith.constant 128 : index
    %125 = vector.load %arg10[%124, %c128_46] : memref<64x256xf32, #tpu.memory_space<vmem>>, vector<8x128xf32>
    tpu.vector_store %arg10[%124, %c128_46], %123 {strides = array<i32>} : memref<64x256xf32, #tpu.memory_space<vmem>>, vector<8x128xf32>,
    %c8_i32_47 = arith.constant 8 : i32
    %126 = arith.muli %c0_i32_21, %c8_i32_47 : i32
    %c5_i32 = arith.constant 5 : i32
    %127 = arith.addi %126, %c5_i32 : i32
    %c8_i32_48 = arith.constant 8 : i32
    %128 = arith.muli %127, %c8_i32_48 : i32
    %129 = tpu.assume_multiple %128, 8 : i32
    %130 = arith.index_cast %129 : i32 to index
    %c0_49 = arith.constant 0 : index
    %131 = vector.load %arg9[%130, %c0_49] : memref<64x256xf32, #tpu.memory_space<vmem>>, vector<8x256xf32>
    %132 = vector.extract_strided_slice %131 {offsets = [0, 0], sizes = [8, 128], strides = [1, 1]} : vector<8x256xf32> to vector<8x128xf32>
    %133 = arith.mulf %116, %11 : vector<8x128xf32>
    %134 = arith.mulf %123, %19 : vector<8x128xf32>
    %135 = arith.addf %132, %133 : vector<8x128xf32>
    %136 = arith.addf %135, %134 : vector<8x128xf32>
    %137 = arith.index_cast %129 : i32 to index
    %c0_50 = arith.constant 0 : index
    %138 = vector.load %arg10[%137, %c0_50] : memref<64x256xf32, #tpu.memory_space<vmem>>, vector<8x128xf32>
    tpu.vector_store %arg10[%137, %c0_50], %136 {strides = array<i32>} : memref<64x256xf32, #tpu.memory_space<vmem>>, vector<8x128xf32>,
    %139 = vector.extract_strided_slice %131 {offsets = [0, 128], sizes = [8, 128], strides = [1, 1]} : vector<8x256xf32> to vector<8x128xf32>
    %140 = arith.mulf %116, %15 : vector<8x128xf32>
    %141 = arith.mulf %123, %23 : vector<8x128xf32>
    %142 = arith.addf %139, %140 : vector<8x128xf32>
    %143 = arith.addf %142, %141 : vector<8x128xf32>
    %144 = arith.index_cast %129 : i32 to index
    %c128_51 = arith.constant 128 : index
    %145 = vector.load %arg10[%144, %c128_51] : memref<64x256xf32, #tpu.memory_space<vmem>>, vector<8x128xf32>
    tpu.vector_store %arg10[%144, %c128_51], %143 {strides = array<i32>} : memref<64x256xf32, #tpu.memory_space<vmem>>, vector<8x128xf32>,
    %c8_i32_52 = arith.constant 8 : i32
    %146 = arith.muli %c0_i32_21, %c8_i32_52 : i32
    %c6_i32 = arith.constant 6 : i32
    %147 = arith.addi %146, %c6_i32 : i32
    %c8_i32_53 = arith.constant 8 : i32
    %148 = arith.muli %147, %c8_i32_53 : i32
    %149 = tpu.assume_multiple %148, 8 : i32
    %150 = arith.index_cast %149 : i32 to index
    %c0_54 = arith.constant 0 : index
    %151 = vector.load %arg9[%150, %c0_54] : memref<64x256xf32, #tpu.memory_space<vmem>>, vector<8x256xf32>
    %152 = vector.extract_strided_slice %151 {offsets = [0, 0], sizes = [8, 128], strides = [1, 1]} : vector<8x256xf32> to vector<8x128xf32>
    %153 = arith.mulf %136, %11 : vector<8x128xf32>
    %154 = arith.mulf %143, %19 : vector<8x128xf32>
    %155 = arith.addf %152, %153 : vector<8x128xf32>
    %156 = arith.addf %155, %154 : vector<8x128xf32>
    %157 = arith.index_cast %149 : i32 to index
    %c0_55 = arith.constant 0 : index
    %158 = vector.load %arg10[%157, %c0_55] : memref<64x256xf32, #tpu.memory_space<vmem>>, vector<8x128xf32>
    tpu.vector_store %arg10[%157, %c0_55], %156 {strides = array<i32>} : memref<64x256xf32, #tpu.memory_space<vmem>>, vector<8x128xf32>,
    %159 = vector.extract_strided_slice %151 {offsets = [0, 128], sizes = [8, 128], strides = [1, 1]} : vector<8x256xf32> to vector<8x128xf32>
    %160 = arith.mulf %136, %15 : vector<8x128xf32>
    %161 = arith.mulf %143, %23 : vector<8x128xf32>
    %162 = arith.addf %159, %160 : vector<8x128xf32>
    %163 = arith.addf %162, %161 : vector<8x128xf32>
    %164 = arith.index_cast %149 : i32 to index
    %c128_56 = arith.constant 128 : index
    %165 = vector.load %arg10[%164, %c128_56] : memref<64x256xf32, #tpu.memory_space<vmem>>, vector<8x128xf32>
    tpu.vector_store %arg10[%164, %c128_56], %163 {strides = array<i32>} : memref<64x256xf32, #tpu.memory_space<vmem>>, vector<8x128xf32>,
    %c8_i32_57 = arith.constant 8 : i32
    %166 = arith.muli %c0_i32_21, %c8_i32_57 : i32
    %c7_i32 = arith.constant 7 : i32
    %167 = arith.addi %166, %c7_i32 : i32
    %c8_i32_58 = arith.constant 8 : i32
    %168 = arith.muli %167, %c8_i32_58 : i32
    %169 = tpu.assume_multiple %168, 8 : i32
    %170 = arith.index_cast %169 : i32 to index
    %c0_59 = arith.constant 0 : index
    %171 = vector.load %arg9[%170, %c0_59] : memref<64x256xf32, #tpu.memory_space<vmem>>, vector<8x256xf32>
    %172 = vector.extract_strided_slice %171 {offsets = [0, 0], sizes = [8, 128], strides = [1, 1]} : vector<8x256xf32> to vector<8x128xf32>
    %173 = arith.mulf %156, %11 : vector<8x128xf32>
    %174 = arith.mulf %163, %19 : vector<8x128xf32>
    %175 = arith.addf %172, %173 : vector<8x128xf32>
    %176 = arith.addf %175, %174 : vector<8x128xf32>
    %177 = arith.index_cast %169 : i32 to index
    %c0_60 = arith.constant 0 : index
    %178 = vector.load %arg10[%177, %c0_60] : memref<64x256xf32, #tpu.memory_space<vmem>>, vector<8x128xf32>
    tpu.vector_store %arg10[%177, %c0_60], %176 {strides = array<i32>} : memref<64x256xf32, #tpu.memory_space<vmem>>, vector<8x128xf32>,
    %179 = vector.extract_strided_slice %171 {offsets = [0, 128], sizes = [8, 128], strides = [1, 1]} : vector<8x256xf32> to vector<8x128xf32>
    %180 = arith.mulf %156, %15 : vector<8x128xf32>
    %181 = arith.mulf %163, %23 : vector<8x128xf32>
    %182 = arith.addf %179, %180 : vector<8x128xf32>
    %183 = arith.addf %182, %181 : vector<8x128xf32>
    %184 = arith.index_cast %169 : i32 to index
    %c128_61 = arith.constant 128 : index
    %185 = vector.load %arg10[%184, %c128_61] : memref<64x256xf32, #tpu.memory_space<vmem>>, vector<8x128xf32>
    tpu.vector_store %arg10[%184, %c128_61], %183 {strides = array<i32>} : memref<64x256xf32, #tpu.memory_space<vmem>>, vector<8x128xf32>,
    %c1_i32_62 = arith.constant 1 : i32
    %c0_63 = arith.constant 0 : index
    %c0_64 = arith.constant 0 : index
    %186 = vector.load %arg11[%c0_63, %c0_64] : memref<8x256xf32, #tpu.memory_space<vmem>>, vector<8x128xf32>
    tpu.vector_store %arg11[%c0_63, %c0_64], %176 {strides = array<i32>} : memref<8x256xf32, #tpu.memory_space<vmem>>, vector<8x128xf32>,
    %c0_65 = arith.constant 0 : index
    %c128_66 = arith.constant 128 : index
    %187 = vector.load %arg11[%c0_65, %c128_66] : memref<8x256xf32, #tpu.memory_space<vmem>>, vector<8x128xf32>
    tpu.vector_store %arg11[%c0_65, %c128_66], %183 {strides = array<i32>} : memref<8x256xf32, #tpu.memory_space<vmem>>, vector<8x128xf32>,
    %c0_i32_67 = arith.constant 0 : i32
    %188 = arith.cmpi eq, %arg1, %c0_i32_67 : i32
    %189 = arith.extui %188 : i1 to i32
    %c0_i32_68 = arith.constant 0 : i32
    %190 = arith.cmpi ne, %189, %c0_i32_68 : i32
    scf.if %190 {
      %c56 = arith.constant 56 : index
      %c0_77 = arith.constant 0 : index
      %197 = vector.load %arg10[%c56, %c0_77] : memref<64x256xf32, #tpu.memory_space<vmem>>, vector<8x256xf32>
      %c0_78 = arith.constant 0 : index
      %c0_79 = arith.constant 0 : index
      %c0_80 = arith.constant 0 : index
      %198 = vector.load %arg8[%c0_78, %c0_79, %c0_80] : memref<1x8x256xf32, #tpu.memory_space<vmem>>, vector<1x8x256xf32>
      %199 = vector.shape_cast %198 : vector<1x8x256xf32> to vector<8x256xf32>
      %200 = vector.shape_cast %197 : vector<8x256xf32> to vector<1x8x256xf32>
      tpu.vector_store %arg8[%c0_78, %c0_79, %c0_80], %200 {strides = array<i32>} : memref<1x8x256xf32, #tpu.memory_space<vmem>>, vector<1x8x256xf32>,
    } else {
    }
    %c0_69 = arith.constant 0 : index
    %c0_70 = arith.constant 0 : index
    %191 = vector.load %arg10[%c0_69, %c0_70] : memref<64x256xf32, #tpu.memory_space<vmem>>, vector<64x256xf32>
    %c0_71 = arith.constant 0 : index
    %c0_72 = arith.constant 0 : index
    %192 = vector.load %arg6[%c0_71, %c0_72] : memref<256x128xf32, #tpu.memory_space<vmem>>, vector<256x128xf32>
    %cst_73 = arith.constant dense<0.000000e+00> : vector<64x128xf32>
    %193 = tpu.matmul %191, %192, %cst_73 {dimension_numbers = #tpu.dot_dimension_numbers<[1], [0], [0], [1], [0, 0, 1, 1], [], []>} : vector<64x256xf32>, vector<256x128xf32>, vector<64x128xf32> -> vector<64x128xf32>
    %c0_74 = arith.constant 0 : index
    %c0_75 = arith.constant 0 : index
    %c0_76 = arith.constant 0 : index
    %194 = vector.load %arg7[%c0_74, %c0_75, %c0_76] : memref<1x64x128xf32, #tpu.memory_space<vmem>>, vector<1x64x128xf32>
    %195 = vector.shape_cast %194 : vector<1x64x128xf32> to vector<64x128xf32>
    %196 = vector.shape_cast %193 : vector<64x128xf32> to vector<1x64x128xf32>
    tpu.vector_store %arg7[%c0_74, %c0_75, %c0_76], %196 {strides = array<i32>} : memref<1x64x128xf32, #tpu.memory_space<vmem>>, vector<1x64x128xf32>,
    return
  }
  func.func @transform_0(%arg0: i32, %arg1: i32) -> (i32, i32, i32) {
    %c0_i32 = arith.constant 0 : i32
    %c0_i32_0 = arith.constant 0 : i32
    return %arg0, %arg1, %c0_i32 : i32, i32, i32
  }
  func.func @transform_1(%arg0: i32, %arg1: i32) -> (i32, i32, i32) {
    %c0_i32 = arith.constant 0 : i32
    %c0_i32_0 = arith.constant 0 : i32
    %c0_i32_1 = arith.constant 0 : i32
    return %arg0, %c0_i32, %c0_i32_0 : i32, i32, i32
  }
  func.func @transform_2(%arg0: i32, %arg1: i32) -> (i32, i32, i32) {
    %c0_i32 = arith.constant 0 : i32
    %c0_i32_0 = arith.constant 0 : i32
    %c0_i32_1 = arith.constant 0 : i32
    %c0_i32_2 = arith.constant 0 : i32
    return %c0_i32, %c0_i32_0, %c0_i32_1 : i32, i32, i32
  }
  func.func @transform_3(%arg0: i32, %arg1: i32) -> (i32, i32) {
    %c0_i32 = arith.constant 0 : i32
    %c0_i32_0 = arith.constant 0 : i32
    %c0_i32_1 = arith.constant 0 : i32
    return %c0_i32, %c0_i32_0 : i32, i32
  }
  func.func @transform_4(%arg0: i32, %arg1: i32) -> (i32, i32) {
    %c0_i32 = arith.constant 0 : i32
    %c0_i32_0 = arith.constant 0 : i32
    %c0_i32_1 = arith.constant 0 : i32
    return %c0_i32, %c0_i32_0 : i32, i32
  }
  func.func @transform_5(%arg0: i32, %arg1: i32) -> (i32, i32, i32) {
    %c0_i32 = arith.constant 0 : i32
    %c0_i32_0 = arith.constant 0 : i32
    return %arg0, %arg1, %c0_i32 : i32, i32, i32
  }
  func.func @transform_6(%arg0: i32, %arg1: i32) -> (i32, i32, i32) {
    %c0_i32 = arith.constant 0 : i32
    %c0_i32_0 = arith.constant 0 : i32
    %c0_i32_1 = arith.constant 0 : i32
    return %arg0, %c0_i32, %c0_i32_0 : i32, i32, i32
  }
}

</mosaic_0001>

<llo_original>
// kernel: tpu_custom_call.1
$region0: #{tpu_custom_call.1}
  #allocation0 [shape = 'u32[]', space=smem, size = 0x4, offset = 0x4, fixed_abs, tag = 'smem constant byte address 0x4 - core index']
  #allocation1 [shape = 'u32[72,128]{1,0:T(1,128)}', space=vmem, size = 0x9000, scoped, tag = 'internal scratch']
  #allocation2 [shape = 'f32[64,256]{1,0:T(8,128)}', space=vmem, size = 0x10000, scoped, tag = 'scratch operand']
  #allocation3 [shape = 'f32[64,256]{1,0:T(8,128)}', space=vmem, size = 0x10000, scoped, tag = 'scratch operand']
  #allocation4 [shape = 'f32[8,256]{1,0:T(8,128)}', space=vmem, size = 0x2000, scoped, tag = 'scratch operand']
  %s0 = inlined_call_operand.vmem [shape: f32[1,64,4], index: 0, kind: input, shape index: {}]
  %s1 = inlined_call_operand.vmem [shape: f32[1,8,256], index: 1, kind: input, shape index: {}]
  %s2 = inlined_call_operand.vmem [shape: f32[2,2,128], index: 2, kind: input, shape index: {}]
  %s3 = inlined_call_operand.vmem [shape: f32[4,256], index: 3, kind: input, shape index: {}]
  %s4 = inlined_call_operand.hbm [shape: f32[256,128], index: 4, kind: input, shape index: {}]
  %s5 = inlined_call_operand.hbm [shape: f32[1,64,128], index: 5, kind: output, shape index: {0}]
  %s6 = inlined_call_operand.hbm [shape: f32[1,8,256], index: 6, kind: output, shape index: {1}]
  %7 = xla_tuple %s5, %s6
  %s8 = sld [smem:[#allocation0]]
  $region50: #{tpu_custom_call.1} parent=0
    _
  %s10 = ssub.s32 1, %s8
  %s11 = scalar_select 0, %s10, %s8
  $region1: #{tpu_custom_call.1} parent=0
    #allocation5 [shape = 'u8[131072]{0}', space=vmem, size = 0x20000, scoped, tag = 'input window, operand 4, single buffered']
    #allocation6 [shape = 's32[1]{0}', space=sflag, size = 0x4, scoped, tag = 'scoped memory for tpu_custom_call.1']
    #allocation7 [shape = 's32[1]{0}', space=sflag, size = 0x4, scoped, tag = 'scoped memory for tpu_custom_call.1']
    #allocation8 [shape = 'u8[32768]{0}', space=vmem, size = 0x8000, scoped, tag = 'output window, operand 0, single buffered']
    #allocation9 [shape = 'u8[8192]{0}', space=vmem, size = 0x2000, scoped, tag = 'output window, operand 1, single buffered']
    #allocation10 [shape = 's32[1]{0}', space=sflag, size = 0x4, scoped, tag = 'scoped memory for tpu_custom_call.1']
    %12 = vsyncpa [#allocation6], 0
    %13 = vsyncpa [#allocation7], 0
    %14 = vsyncpa [#allocation10], 0
    // Predicated region
    $region2: #{tpu_custom_call.1} parent=1 // pred_check
      _
    $region3: #{tpu_custom_call.1} parent=1 // pred_check_branch
      %16 = sbr.rel (0) target = $region5
    $region4: #{tpu_custom_call.1} parent=1 // pred_region
      _
    $region5: #{tpu_custom_call.1} parent=1 // pred_fallthru
      _
    // Predicated region
    $region6: #{tpu_custom_call.1} parent=1 // pred_check
      _
    $region7: #{tpu_custom_call.1} parent=1 // pred_check_branch
      %18 = sbr.rel (0) target = $region9
    $region8: #{tpu_custom_call.1} parent=1 // pred_region
      _
    $region9: #{tpu_custom_call.1} parent=1 // pred_fallthru
      _
    // Predicated region
    $region10: #{tpu_custom_call.1} parent=1 // pred_check
      _
    $region11: #{tpu_custom_call.1} parent=1 // pred_check_branch
      %20 = sbr.rel (0) target = $region13
    $region12: #{tpu_custom_call.1} parent=1 // pred_region
      _
    $region13: #{tpu_custom_call.1} parent=1 // pred_fallthru
      _
    // Predicated region
    $region14: #{tpu_custom_call.1} parent=1 // pred_check
      _
    $region15: #{tpu_custom_call.1} parent=1 // pred_check_branch
      %22 = sbr.rel (0) target = $region17
    $region16: #{tpu_custom_call.1} parent=1 // pred_region
      _
    $region17: #{tpu_custom_call.1} parent=1 // pred_fallthru
      _
    // Predicated region
    $region18: #{tpu_custom_call.1} parent=1 // pred_check
      _
    $region19: #{tpu_custom_call.1} parent=1 // pred_check_branch
      %24 = sbr.rel (0) target = $region21
    $region20: #{tpu_custom_call.1} parent=1 // pred_region
      %26 = vsyncadd [#allocation6], 0
      %s27 = sshll.u32 %s4, 4
      %s28 = int_to_ptr.hbm [resolvable:$true] %s27
      %s29 = sshll.u32 [#allocation5], 4
      %s30 = int_to_ptr.vmem [resolvable:$true] %s29
      %35 = dma.hbm_to_vmem [thread:$0]  %s28, 4096, %s30, [#allocation6], 128, 128, 8
    $region21: #{tpu_custom_call.1} parent=1 // pred_fallthru
      _
    // Predicated region
    $region22: #{tpu_custom_call.1} parent=1 // pred_check
      _
    $region23: #{tpu_custom_call.1} parent=1 // pred_check_branch
      %37 = sbr.rel (0) target = $region25
    $region24: #{tpu_custom_call.1} parent=1 // pred_region
      %39 = dma.done [#allocation6], 4096
    $region25: #{tpu_custom_call.1} parent=1 // pred_fallthru
      _
    %p40 = scmp.eq.s32.totalorder 0, 0
    // Predicated region
    $region26: #{tpu_custom_call.1} parent=1 // pred_check
      %p41 = pneg %p40
    $region27: #{tpu_custom_call.1} parent=1 // pred_check_branch
      %43 = sbr.rel (%p41) target = $region29
    $region28: #{tpu_custom_call.1} parent=1 // pred_region
      %v44 = vld [vmem:[%s1] sm:$0xff]
      %v45 = vld [vmem:[%s1 + $0x8] sm:$0xff]
      %46 = vst [vmem:[#allocation4] sm:$0xff] %v44
      %47 = vst [vmem:[#allocation4 + $0x8] sm:$0xff] %v45
    $region29: #{tpu_custom_call.1} parent=1 // pred_fallthru
      _
    %v48 = vld [vmem:[%s0] sm:$0xff]
    %v49 = vld [vmem:[%s0 + $0x8] sm:$0xff]
    %v50 = vld [vmem:[%s0 + $0x10] sm:$0xff]
    %v51 = vld [vmem:[%s0 + $0x18] sm:$0xff]
    %v52 = vld [vmem:[%s0 + $0x20] sm:$0xff]
    %v53 = vld [vmem:[%s0 + $0x28] sm:$0xff]
    %v54 = vld [vmem:[%s0 + $0x30] sm:$0xff]
    %v55 = vld [vmem:[%s0 + $0x38] sm:$0xff]
    %v56 = vld [vmem:[%s3] sm:$0xff]
    %58 = vst [vmem:[#allocation1] ss:$2 sm:$0xff] %v56
    %v59 = vld.sshfl [vmem:[#allocation1] sm:$0xff pattern:$0x75316420]
    %v60 = vld.sshfl [vmem:[#allocation1 + $0x8] sm:$0xff pattern:$0x75316420]
    %vm61 = vcmask 31744
    %v63 = vsel %vm61, %v48, 0
    %v66 = vsel %vm61, %v49, 0
    %v69 = vsel %vm61, %v50, 0
    %v72 = vsel %vm61, %v51, 0
    %v75 = vsel %vm61, %v52, 0
    %v78 = vsel %vm61, %v53, 0
    %v81 = vsel %vm61, %v54, 0
    %v84 = vsel %vm61, %v55, 0
    %vm86 = vcmask 1043456
    %v87 = vsel %vm86, %v59, 0
    %v89 = vsel %vm86, %v60, 0
    %91 = vmatpush.msra.mxu0 0.0
    %92 = vmatpush.msra.mxu0 0.0
    %93 = vmatpush.msra.mxu0 0.0
    %94 = vmatpush.msra.mxu0 0.0
    %95 = vmatpush.msra.mxu0 0.0
    %96 = vmatpush.msra.mxu0 0.0
    %97 = vmatpush.msra.mxu0 0.0
    %98 = vmatpush.msra.mxu0 0.0
    %99 = vmatpush.msra.mxu0 0.0
    %100 = vmatpush.msra.mxu0 0.0
    %101 = vmatpush.msra.mxu0 0.0
    %102 = vmatpush.msra.mxu0 0.0
    %103 = vmatpush.msra.mxu0 0.0
    %104 = vmatpush.msra.mxu0 0.0
    %105 = vmatpush.msra.mxu0 0.0
    %106 = vmatpush.msra.mxu0 %v87
    %107 = vmatmul.f32.gmra.mxu0 %v63
    %v108 = vpop.f32.mrf.mxu0
    %v109 = vadd.f32 0.0, %v108
    %110 = vmatmul.f32.gmra.mxu0 %v66
    %v111 = vpop.f32.mrf.mxu0
    %v112 = vadd.f32 0.0, %v111
    %113 = vmatmul.f32.gmra.mxu0 %v69
    %v114 = vpop.f32.mrf.mxu0
    %v115 = vadd.f32 0.0, %v114
    %116 = vmatmul.f32.gmra.mxu0 %v72
    %v117 = vpop.f32.mrf.mxu0
    %v118 = vadd.f32 0.0, %v117
    %119 = vmatmul.f32.gmra.mxu0 %v75
    %v120 = vpop.f32.mrf.mxu0
    %v121 = vadd.f32 0.0, %v120
    %122 = vmatmul.f32.gmra.mxu0 %v78
    %v123 = vpop.f32.mrf.mxu0
    %v124 = vadd.f32 0.0, %v123
    %125 = vmatmul.f32.gmra.mxu0 %v81
    %v126 = vpop.f32.mrf.mxu0
    %v127 = vadd.f32 0.0, %v126
    %128 = vmatmul.f32.gmra.mxu0 %v84
    %v129 = vpop.f32.mrf.mxu0
    %v130 = vadd.f32 0.0, %v129
    %131 = vdwg.mxu0
    %132 = vmatpush.msra.mxu0 0.0
    %133 = vmatpush.msra.mxu0 0.0
    %134 = vmatpush.msra.mxu0 0.0
    %135 = vmatpush.msra.mxu0 0.0
    %136 = vmatpush.msra.mxu0 0.0
    %137 = vmatpush.msra.mxu0 0.0
    %138 = vmatpush.msra.mxu0 0.0
    %139 = vmatpush.msra.mxu0 0.0
    %140 = vmatpush.msra.mxu0 0.0
    %141 = vmatpush.msra.mxu0 0.0
    %142 = vmatpush.msra.mxu0 0.0
    %143 = vmatpush.msra.mxu0 0.0
    %144 = vmatpush.msra.mxu0 0.0
    %145 = vmatpush.msra.mxu0 0.0
    %146 = vmatpush.msra.mxu0 0.0
    %147 = vmatpush.msra.mxu0 %v89
    %148 = vmatmul.f32.gmra.mxu0 %v63
    %v149 = vpop.f32.mrf.mxu0
    %v150 = vadd.f32 0.0, %v149
    %151 = vmatmul.f32.gmra.mxu0 %v66
    %v152 = vpop.f32.mrf.mxu0
    %v153 = vadd.f32 0.0, %v152
    %154 = vmatmul.f32.gmra.mxu0 %v69
    %v155 = vpop.f32.mrf.mxu0
    %v156 = vadd.f32 0.0, %v155
    %157 = vmatmul.f32.gmra.mxu0 %v72
    %v158 = vpop.f32.mrf.mxu0
    %v159 = vadd.f32 0.0, %v158
    %160 = vmatmul.f32.gmra.mxu0 %v75
    %v161 = vpop.f32.mrf.mxu0
    %v162 = vadd.f32 0.0, %v161
    %163 = vmatmul.f32.gmra.mxu0 %v78
    %v164 = vpop.f32.mrf.mxu0
    %v165 = vadd.f32 0.0, %v164
    %166 = vmatmul.f32.gmra.mxu0 %v81
    %v167 = vpop.f32.mrf.mxu0
    %v168 = vadd.f32 0.0, %v167
    %169 = vmatmul.f32.gmra.mxu0 %v84
    %v170 = vpop.f32.mrf.mxu0
    %v171 = vadd.f32 0.0, %v170
    %172 = vdwg.mxu0
    %173 = vst [vmem:[#allocation2] sm:$0xff] %v109
    %174 = vst [vmem:[#allocation2 + $0x8] sm:$0xff] %v150
    %175 = vst [vmem:[#allocation2 + $0x10] sm:$0xff] %v112
    %176 = vst [vmem:[#allocation2 + $0x18] sm:$0xff] %v153
    %177 = vst [vmem:[#allocation2 + $0x20] sm:$0xff] %v115
    %178 = vst [vmem:[#allocation2 + $0x28] sm:$0xff] %v156
    %179 = vst [vmem:[#allocation2 + $0x30] sm:$0xff] %v118
    %180 = vst [vmem:[#allocation2 + $0x38] sm:$0xff] %v159
    %181 = vst [vmem:[#allocation2 + $0x40] sm:$0xff] %v121
    %182 = vst [vmem:[#allocation2 + $0x48] sm:$0xff] %v162
    %183 = vst [vmem:[#allocation2 + $0x50] sm:$0xff] %v124
    %184 = vst [vmem:[#allocation2 + $0x58] sm:$0xff] %v165
    %185 = vst [vmem:[#allocation2 + $0x60] sm:$0xff] %v127
    %186 = vst [vmem:[#allocation2 + $0x68] sm:$0xff] %v168
    %187 = vst [vmem:[#allocation2 + $0x70] sm:$0xff] %v130
    %188 = vst [vmem:[#allocation2 + $0x78] sm:$0xff] %v171
    %v189 = vld [vmem:[%s2] sm:$0x1]
    %v190 = vperm.slane %v189, 0
    %v191 = vld [vmem:[%s2 + $0x1] sm:$0x1]
    %v192 = vperm.slane %v191, 0
    %s193 = scalar_lea.vmem %s2, 2
    %v194 = vld [vmem:[%s193] sm:$0x1]
    %v195 = vperm.slane %v194, 0
    %v196 = vld [vmem:[%s193 + $0x1] sm:$0x1]
    %v197 = vperm.slane %v196, 0
    %v198 = vld [vmem:[#allocation4] sm:$0xff]
    %v199 = vld [vmem:[#allocation4 + $0x8] sm:$0xff]
    %s200 = smul.u32 0, 2
    %s201 = smul.addr %s200, 8
    %s202 = scalar_lea.vmem [#allocation2], %s201
    %v203 = vld [vmem:[%s202] sm:$0xff]
    %v204 = vld [vmem:[%s202 + $0x8] sm:$0xff]
    %v205 = vmul.f32 %v198, %v190
    %v206 = vmul.f32 %v199, %v195
    %v207 = vadd.f32 %v203, %v205
    %v208 = vadd.f32 %v207, %v206
    %s209 = smul.addr %s200, 8
    %s210 = scalar_lea.vmem [#allocation3], %s209
    %211 = vst [vmem:[%s210] sm:$0xff] %v208
    %v212 = vmul.f32 %v198, %v192
    %v213 = vmul.f32 %v199, %v197
    %v214 = vadd.f32 %v204, %v212
    %v215 = vadd.f32 %v214, %v213
    %216 = vst [vmem:[%s210 + $0x8] sm:$0xff] %v215
    %s217 = smul.u32 1, 2
    %s218 = smul.addr %s217, 8
    %s219 = scalar_lea.vmem [#allocation2], %s218
    %v220 = vld [vmem:[%s219] sm:$0xff]
    %v221 = vld [vmem:[%s219 + $0x8] sm:$0xff]
    %v222 = vmul.f32 %v208, %v190
    %v223 = vmul.f32 %v215, %v195
    %v224 = vadd.f32 %v220, %v222
    %v225 = vadd.f32 %v224, %v223
    %s226 = smul.addr %s217, 8
    %s227 = scalar_lea.vmem [#allocation3], %s226
    %228 = vst [vmem:[%s227] sm:$0xff] %v225
    %v229 = vmul.f32 %v208, %v192
    %v230 = vmul.f32 %v215, %v197
    %v231 = vadd.f32 %v221, %v229
    %v232 = vadd.f32 %v231, %v230
    %233 = vst [vmem:[%s227 + $0x8] sm:$0xff] %v232
    %s234 = smul.u32 2, 2
    %s235 = smul.addr %s234, 8
    %s236 = scalar_lea.vmem [#allocation2], %s235
    %v237 = vld [vmem:[%s236] sm:$0xff]
    %v238 = vld [vmem:[%s236 + $0x8] sm:$0xff]
    %v239 = vmul.f32 %v225, %v190
    %v240 = vmul.f32 %v232, %v195
    %v241 = vadd.f32 %v237, %v239
    %v242 = vadd.f32 %v241, %v240
    %s243 = smul.addr %s234, 8
    %s244 = scalar_lea.vmem [#allocation3], %s243
    %245 = vst [vmem:[%s244] sm:$0xff] %v242
    %v246 = vmul.f32 %v225, %v192
    %v247 = vmul.f32 %v232, %v197
    %v248 = vadd.f32 %v238, %v246
    %v249 = vadd.f32 %v248, %v247
    %250 = vst [vmem:[%s244 + $0x8] sm:$0xff] %v249
    %s251 = smul.u32 3, 2
    %s252 = smul.addr %s251, 8
    %s253 = scalar_lea.vmem [#allocation2], %s252
    %v254 = vld [vmem:[%s253] sm:$0xff]
    %v255 = vld [vmem:[%s253 + $0x8] sm:$0xff]
    %v256 = vmul.f32 %v242, %v190
    %v257 = vmul.f32 %v249, %v195
    %v258 = vadd.f32 %v254, %v256
    %v259 = vadd.f32 %v258, %v257
    %s260 = smul.addr %s251, 8
    %s261 = scalar_lea.vmem [#allocation3], %s260
    %262 = vst [vmem:[%s261] sm:$0xff] %v259
    %v263 = vmul.f32 %v242, %v192
    %v264 = vmul.f32 %v249, %v197
    %v265 = vadd.f32 %v255, %v263
    %v266 = vadd.f32 %v265, %v264
    %267 = vst [vmem:[%s261 + $0x8] sm:$0xff] %v266
    %s268 = smul.u32 4, 2
    %s269 = smul.addr %s268, 8
    %s270 = scalar_lea.vmem [#allocation2], %s269
    %v271 = vld [vmem:[%s270] sm:$0xff]
    %v272 = vld [vmem:[%s270 + $0x8] sm:$0xff]
    %v273 = vmul.f32 %v259, %v190
    %v274 = vmul.f32 %v266, %v195
    %v275 = vadd.f32 %v271, %v273
    %v276 = vadd.f32 %v275, %v274
    %s277 = smul.addr %s268, 8
    %s278 = scalar_lea.vmem [#allocation3], %s277
    %279 = vst [vmem:[%s278] sm:$0xff] %v276
    %v280 = vmul.f32 %v259, %v192
    %v281 = vmul.f32 %v266, %v197
    %v282 = vadd.f32 %v272, %v280
    %v283 = vadd.f32 %v282, %v281
    %284 = vst [vmem:[%s278 + $0x8] sm:$0xff] %v283
    %s285 = smul.u32 5, 2
    %s286 = smul.addr %s285, 8
    %s287 = scalar_lea.vmem [#allocation2], %s286
    %v288 = vld [vmem:[%s287] sm:$0xff]
    %v289 = vld [vmem:[%s287 + $0x8] sm:$0xff]
    %v290 = vmul.f32 %v276, %v190
    %v291 = vmul.f32 %v283, %v195
    %v292 = vadd.f32 %v288, %v290
    %v293 = vadd.f32 %v292, %v291
    %s294 = smul.addr %s285, 8
    %s295 = scalar_lea.vmem [#allocation3], %s294
    %296 = vst [vmem:[%s295] sm:$0xff] %v293
    %v297 = vmul.f32 %v276, %v192
    %v298 = vmul.f32 %v283, %v197
    %v299 = vadd.f32 %v289, %v297
    %v300 = vadd.f32 %v299, %v298
    %301 = vst [vmem:[%s295 + $0x8] sm:$0xff] %v300
    %s302 = smul.u32 6, 2
    %s303 = smul.addr %s302, 8
    %s304 = scalar_lea.vmem [#allocation2], %s303
    %v305 = vld [vmem:[%s304] sm:$0xff]
    %v306 = vld [vmem:[%s304 + $0x8] sm:$0xff]
    %v307 = vmul.f32 %v293, %v190
    %v308 = vmul.f32 %v300, %v195
    %v309 = vadd.f32 %v305, %v307
    %v310 = vadd.f32 %v309, %v308
    %s311 = smul.addr %s302, 8
    %s312 = scalar_lea.vmem [#allocation3], %s311
    %313 = vst [vmem:[%s312] sm:$0xff] %v310
    %v314 = vmul.f32 %v293, %v192
    %v315 = vmul.f32 %v300, %v197
    %v316 = vadd.f32 %v306, %v314
    %v317 = vadd.f32 %v316, %v315
    %318 = vst [vmem:[%s312 + $0x8] sm:$0xff] %v317
    %s319 = smul.u32 7, 2
    %s320 = smul.addr %s319, 8
    %s321 = scalar_lea.vmem [#allocation2], %s320
    %v322 = vld [vmem:[%s321] sm:$0xff]
    %v323 = vld [vmem:[%s321 + $0x8] sm:$0xff]
    %v324 = vmul.f32 %v310, %v190
    %v325 = vmul.f32 %v317, %v195
    %v326 = vadd.f32 %v322, %v324
    %v327 = vadd.f32 %v326, %v325
    %s328 = smul.addr %s319, 8
    %s329 = scalar_lea.vmem [#allocation3], %s328
    %330 = vst [vmem:[%s329] sm:$0xff] %v327
    %v331 = vmul.f32 %v310, %v192
    %v332 = vmul.f32 %v317, %v197
    %v333 = vadd.f32 %v323, %v331
    %v334 = vadd.f32 %v333, %v332
    %335 = vst [vmem:[%s329 + $0x8] sm:$0xff] %v334
    %336 = vst [vmem:[#allocation4] sm:$0xff] %v327
    %337 = vst [vmem:[#allocation4 + $0x8] sm:$0xff] %v334
    // Predicated region
    $region30: #{tpu_custom_call.1} parent=1 // pred_check
      %p338 = pneg %p40
    $region31: #{tpu_custom_call.1} parent=1 // pred_check_branch
      %340 = sbr.rel (%p338) target = $region33
    $region32: #{tpu_custom_call.1} parent=1 // pred_region
      %v341 = vld [vmem:[#allocation3 + $0x70] sm:$0xff]
      %v342 = vld [vmem:[#allocation3 + $0x78] sm:$0xff]
      %343 = vst [vmem:[#allocation9] sm:$0xff] %v341
      %344 = vst [vmem:[#allocation9 + $0x8] sm:$0xff] %v342
    $region33: #{tpu_custom_call.1} parent=1 // pred_fallthru
      _
    %v345 = vld [vmem:[#allocation3] sm:$0xff]
    %v346 = vld [vmem:[#allocation3 + $0x8] sm:$0xff]
    %v347 = vld [vmem:[#allocation3 + $0x10] sm:$0xff]
    %v348 = vld [vmem:[#allocation3 + $0x18] sm:$0xff]
    %v349 = vld [vmem:[#allocation3 + $0x20] sm:$0xff]
    %v350 = vld [vmem:[#allocation3 + $0x28] sm:$0xff]
    %v351 = vld [vmem:[#allocation3 + $0x30] sm:$0xff]
    %v352 = vld [vmem:[#allocation3 + $0x38] sm:$0xff]
    %v353 = vld [vmem:[#allocation3 + $0x40] sm:$0xff]
    %v354 = vld [vmem:[#allocation3 + $0x48] sm:$0xff]
    %v355 = vld [vmem:[#allocation3 + $0x50] sm:$0xff]
    %v356 = vld [vmem:[#allocation3 + $0x58] sm:$0xff]
    %v357 = vld [vmem:[#allocation3 + $0x60] sm:$0xff]
    %v358 = vld [vmem:[#allocation3 + $0x68] sm:$0xff]
    %v359 = vld [vmem:[#allocation3 + $0x70] sm:$0xff]
    %v360 = vld [vmem:[#allocation3 + $0x78] sm:$0xff]
    %v361 = vld [vmem:[#allocation5] sm:$0xff]
    %v362 = vld [vmem:[#allocation5 + $0x8] sm:$0xff]
    %v363 = vld [vmem:[#allocation5 + $0x10] sm:$0xff]
    %v364 = vld [vmem:[#allocation5 + $0x18] sm:$0xff]
    %v365 = vld [vmem:[#allocation5 + $0x20] sm:$0xff]
    %v366 = vld [vmem:[#allocation5 + $0x28] sm:$0xff]
    %v367 = vld [vmem:[#allocation5 + $0x30] sm:$0xff]
    %v368 = vld [vmem:[#allocation5 + $0x38] sm:$0xff]
    %v369 = vld [vmem:[#allocation5 + $0x40] sm:$0xff]
    %v370 = vld [vmem:[#allocation5 + $0x48] sm:$0xff]
    %v371 = vld [vmem:[#allocation5 + $0x50] sm:$0xff]
    %v372 = vld [vmem:[#allocation5 + $0x58] sm:$0xff]
    %v373 = vld [vmem:[#allocation5 + $0x60] sm:$0xff]
    %v374 = vld [vmem:[#allocation5 + $0x68] sm:$0xff]
    %v375 = vld [vmem:[#allocation5 + $0x70] sm:$0xff]
    %v376 = vld [vmem:[#allocation5 + $0x78] sm:$0xff]
    %v377 = vld [vmem:[#allocation5 + $0x80] sm:$0xff]
    %v378 = vld [vmem:[#allocation5 + $0x88] sm:$0xff]
    %v379 = vld [vmem:[#allocation5 + $0x90] sm:$0xff]
    %v380 = vld [vmem:[#allocation5 + $0x98] sm:$0xff]
    %v381 = vld [vmem:[#allocation5 + $0xa0] sm:$0xff]
    %v382 = vld [vmem:[#allocation5 + $0xa8] sm:$0xff]
    %v383 = vld [vmem:[#allocation5 + $0xb0] sm:$0xff]
    %v384 = vld [vmem:[#allocation5 + $0xb8] sm:$0xff]
    %v385 = vld [vmem:[#allocation5 + $0xc0] sm:$0xff]
    %v386 = vld [vmem:[#allocation5 + $0xc8] sm:$0xff]
    %v387 = vld [vmem:[#allocation5 + $0xd0] sm:$0xff]
    %v388 = vld [vmem:[#allocation5 + $0xd8] sm:$0xff]
    %v389 = vld [vmem:[#allocation5 + $0xe0] sm:$0xff]
    %v390 = vld [vmem:[#allocation5 + $0xe8] sm:$0xff]
    %v391 = vld [vmem:[#allocation5 + $0xf0] sm:$0xff]
    %v392 = vld [vmem:[#allocation5 + $0xf8] sm:$0xff]
    %393 = vmatpush.msra.mxu0 %v376
    %394 = vmatpush.msra.mxu0 %v375
    %395 = vmatpush.msra.mxu0 %v374
    %396 = vmatpush.msra.mxu0 %v373
    %397 = vmatpush.msra.mxu0 %v372
    %398 = vmatpush.msra.mxu0 %v371
    %399 = vmatpush.msra.mxu0 %v370
    %400 = vmatpush.msra.mxu0 %v369
    %401 = vmatpush.msra.mxu0 %v368
    %402 = vmatpush.msra.mxu0 %v367
    %403 = vmatpush.msra.mxu0 %v366
    %404 = vmatpush.msra.mxu0 %v365
    %405 = vmatpush.msra.mxu0 %v364
    %406 = vmatpush.msra.mxu0 %v363
    %407 = vmatpush.msra.mxu0 %v362
    %408 = vmatpush.msra.mxu0 %v361
    %409 = vmatmul.f32.gmra.mxu0 %v345
    %v410 = vpop.f32.mrf.mxu0
    %v411 = vadd.f32 0.0, %v410
    %412 = vmatmul.f32.gmra.mxu0 %v347
    %v413 = vpop.f32.mrf.mxu0
    %v414 = vadd.f32 0.0, %v413
    %415 = vmatmul.f32.gmra.mxu0 %v349
    %v416 = vpop.f32.mrf.mxu0
    %v417 = vadd.f32 0.0, %v416
    %418 = vmatmul.f32.gmra.mxu0 %v351
    %v419 = vpop.f32.mrf.mxu0
    %v420 = vadd.f32 0.0, %v419
    %421 = vmatmul.f32.gmra.mxu0 %v353
    %v422 = vpop.f32.mrf.mxu0
    %v423 = vadd.f32 0.0, %v422
    %424 = vmatmul.f32.gmra.mxu0 %v355
    %v425 = vpop.f32.mrf.mxu0
    %v426 = vadd.f32 0.0, %v425
    %427 = vmatmul.f32.gmra.mxu0 %v357
    %v428 = vpop.f32.mrf.mxu0
    %v429 = vadd.f32 0.0, %v428
    %430 = vmatmul.f32.gmra.mxu0 %v359
    %v431 = vpop.f32.mrf.mxu0
    %v432 = vadd.f32 0.0, %v431
    %433 = vdwg.mxu0
    %434 = vmatpush.msra.mxu0 %v392
    %435 = vmatpush.msra.mxu0 %v391
    %436 = vmatpush.msra.mxu0 %v390
    %437 = vmatpush.msra.mxu0 %v389
    %438 = vmatpush.msra.mxu0 %v388
    %439 = vmatpush.msra.mxu0 %v387
    %440 = vmatpush.msra.mxu0 %v386
    %441 = vmatpush.msra.mxu0 %v385
    %442 = vmatpush.msra.mxu0 %v384
    %443 = vmatpush.msra.mxu0 %v383
    %444 = vmatpush.msra.mxu0 %v382
    %445 = vmatpush.msra.mxu0 %v381
    %446 = vmatpush.msra.mxu0 %v380
    %447 = vmatpush.msra.mxu0 %v379
    %448 = vmatpush.msra.mxu0 %v378
    %449 = vmatpush.msra.mxu0 %v377
    %450 = vmatmul.f32.gmra.mxu0 %v346
    %v451 = vpop.f32.mrf.mxu0
    %v452 = vadd.f32 %v411, %v451
    %453 = vmatmul.f32.gmra.mxu0 %v348
    %v454 = vpop.f32.mrf.mxu0
    %v455 = vadd.f32 %v414, %v454
    %456 = vmatmul.f32.gmra.mxu0 %v350
    %v457 = vpop.f32.mrf.mxu0
    %v458 = vadd.f32 %v417, %v457
    %459 = vmatmul.f32.gmra.mxu0 %v352
    %v460 = vpop.f32.mrf.mxu0
    %v461 = vadd.f32 %v420, %v460
    %462 = vmatmul.f32.gmra.mxu0 %v354
    %v463 = vpop.f32.mrf.mxu0
    %v464 = vadd.f32 %v423, %v463
    %465 = vmatmul.f32.gmra.mxu0 %v356
    %v466 = vpop.f32.mrf.mxu0
    %v467 = vadd.f32 %v426, %v466
    %468 = vmatmul.f32.gmra.mxu0 %v358
    %v469 = vpop.f32.mrf.mxu0
    %v470 = vadd.f32 %v429, %v469
    %471 = vmatmul.f32.gmra.mxu0 %v360
    %v472 = vpop.f32.mrf.mxu0
    %v473 = vadd.f32 %v432, %v472
    %474 = vdwg.mxu0
    %475 = vst [vmem:[#allocation8] sm:$0xff] %v452
    %476 = vst [vmem:[#allocation8 + $0x8] sm:$0xff] %v455
    %477 = vst [vmem:[#allocation8 + $0x10] sm:$0xff] %v458
    %478 = vst [vmem:[#allocation8 + $0x18] sm:$0xff] %v461
    %479 = vst [vmem:[#allocation8 + $0x20] sm:$0xff] %v464
    %480 = vst [vmem:[#allocation8 + $0x28] sm:$0xff] %v467
    %481 = vst [vmem:[#allocation8 + $0x30] sm:$0xff] %v470
    %482 = vst [vmem:[#allocation8 + $0x38] sm:$0xff] %v473
    // Predicated region
    $region34: #{tpu_custom_call.1} parent=1 // pred_check
      _
    $region35: #{tpu_custom_call.1} parent=1 // pred_check_branch
      %484 = sbr.rel (0) target = $region37
    $region36: #{tpu_custom_call.1} parent=1 // pred_region
      %486 = vsyncadd [#allocation7], 0
      %s487 = sshll.u32 [#allocation8], 4
      %s488 = int_to_ptr.vmem [resolvable:$true] %s487
      %s489 = sshll.u32 %s5, 4
      %s490 = int_to_ptr.hbm [resolvable:$true] %s489
      %495 = dma.vmem_to_hbm [thread:$0]  %s488, 1024, %s490, [#allocation7], 128, 128, 8
    $region37: #{tpu_custom_call.1} parent=1 // pred_fallthru
      _
    // Predicated region
    $region38: #{tpu_custom_call.1} parent=1 // pred_check
      _
    $region39: #{tpu_custom_call.1} parent=1 // pred_check_branch
      %497 = sbr.rel (0) target = $region41
    $region40: #{tpu_custom_call.1} parent=1 // pred_region
      %499 = vsyncadd [#allocation10], 0
      %s501 = sshll.u32 [#allocation9], 4
      %s502 = int_to_ptr.vmem [resolvable:$true] %s501
      %s503 = sshll.u32 %s6, 4
      %s504 = int_to_ptr.hbm [resolvable:$true] %s503
      %506 = dma.vmem_to_hbm [thread:$0]  %s502, 256, %s504, [#allocation10]
    $region41: #{tpu_custom_call.1} parent=1 // pred_fallthru
      _
    // Predicated region
    $region42: #{tpu_custom_call.1} parent=1 // pred_check
      _
    $region43: #{tpu_custom_call.1} parent=1 // pred_check_branch
      %508 = sbr.rel (0) target = $region45
    $region44: #{tpu_custom_call.1} parent=1 // pred_region
      %510 = dma.done [#allocation7], 1024
    $region45: #{tpu_custom_call.1} parent=1 // pred_fallthru
      _
    // Predicated region
    $region46: #{tpu_custom_call.1} parent=1 // pred_check
      _
    $region47: #{tpu_custom_call.1} parent=1 // pred_check_branch
      %512 = sbr.rel (0) target = $region49
    $region48: #{tpu_custom_call.1} parent=1 // pred_region
      %514 = dma.done [#allocation10], 256
    $region49: #{tpu_custom_call.1} parent=1 // pred_fallthru
      _
    %515 = vsyncpa [#allocation6], 1
    %516 = vsyncpa [#allocation7], 1
    %517 = vsyncpa [#allocation10], 1

</llo_original>
